<compile_context>
chip_gen: v6e
topology: v6e:2x2x1
jax: 0.10.0
libtpu: 0.0.40
codegen_flags: <defaults>
</compile_context>

<pallas_src>
import functools

import jax
import jax.numpy as jnp
from jax.experimental import pallas as pl
from jax.experimental.pallas import tpu as pltpu


_UNROLL_CHUNKS = 8                      # fully unroll the 128-lane chunk loop up to this
_TARGET_STEP_BYTES = 4 * 1024 * 1024    # aim for ~2-8 MiB of input per grid step


def _round_down(a, b):
    return (a // b) * b


_VMEM_CAP_CACHE = [None]


def _vmem_capacity_bytes():
    """Per-TensorCore VMEM capacity (generation-aware tile sizing)."""
    if _VMEM_CAP_CACHE[0] is None:
        try:
            _VMEM_CAP_CACHE[0] = int(pltpu.get_tpu_info().vmem_capacity_bytes)
        except Exception:
            _VMEM_CAP_CACHE[0] = 64 * 1024 * 1024   # conservative (v7x per-TC VMEM)
    return _VMEM_CAP_CACHE[0]


def _make_kernel(tn, tc, ts, s_true, s_blocks):
    """Avg+max global-pool kernel for fixed (trace-time) tile sizes."""
    num_chunks = ts // 128
    inv_s = 1.0 / float(s_true)
    # Valid spatial extent of the *last* tile.  Everything past it is Pallas
    # edge-block padding (undefined contents) and must never reach the accumulators.
    valid_last = s_true - (s_blocks - 1) * ts          # in (0, ts]
    full_last = valid_last // 128                      # fully-valid chunks in the last tile
    rem_lanes = valid_last % 128                       # valid lanes of the crossing chunk

    def _accum_chunks(x_ref, sum_ref, max_ref, count):
        """Accumulate `count` fully-valid 128-lane chunks (no masking, pure VPU)."""
        if count <= 0:
            return

        def one(off):
            chunk = x_ref[:, :, pl.ds(off, 128)].astype(jnp.float32)
            sum_ref[...] = sum_ref[...] + chunk
            max_ref[...] = jnp.maximum(max_ref[...], chunk)

        if count <= _UNROLL_CHUNKS:
            for j in range(count):                      # static, 128-aligned slices
                one(j * 128)
        else:
            @pl.loop(0, count)                          # rolled loop for big tiles
            def _(j):
                one(pl.multiple_of(j * 128, 128))

    def _accum_masked_chunk(x_ref, sum_ref, max_ref, j, n_lanes):
        """Accumulate the single chunk crossing s_true; invalid lanes are masked
        (jnp.where blocks NaN/garbage from the padded edge block)."""
        chunk = x_ref[:, :, j * 128:(j + 1) * 128].astype(jnp.float32)
        lane = jax.lax.broadcasted_iota(jnp.int32, (1, 1, 128), 2)
        valid = lane < n_lanes
        sum_ref[...] = sum_ref[...] + jnp.where(valid, chunk, 0.0)
        max_ref[...] = jnp.maximum(max_ref[...], jnp.where(valid, chunk, -jnp.inf))

    def kernel(x_ref, o_ref, sum_ref, max_ref):
        k = pl.program_id(2)                            # spatial (reduction) axis

        @pl.when(k == 0)
        def _():
            sum_ref[...] = jnp.zeros_like(sum_ref)
            max_ref[...] = jnp.full_like(max_ref, -jnp.inf)

        if valid_last == ts:
            # Every spatial tile (incl. the last) is fully valid: one unmasked path.
            _accum_chunks(x_ref, sum_ref, max_ref, num_chunks)
        else:
            # Masking is confined to the last tile; all other tiles run unmasked.
            if s_blocks > 1:
                @pl.when(k < s_blocks - 1)
                def _():
                    _accum_chunks(x_ref, sum_ref, max_ref, num_chunks)

            @pl.when(k == s_blocks - 1)
            def _():
                _accum_chunks(x_ref, sum_ref, max_ref, full_last)
                if rem_lanes:
                    _accum_masked_chunk(x_ref, sum_ref, max_ref, full_last, rem_lanes)
                # Chunks entirely past s_true are skipped at trace time.

        # Finalize: one 128->1 cross-lane reduction, scale by 1/S, lane-dense store.
        @pl.when(k == s_blocks - 1)
        def _():
            avg = (jnp.sum(sum_ref[...], axis=-1) * inv_s).astype(o_ref.dtype)   # (tn, tc)
            mx = jnp.max(max_ref[...], axis=-1).astype(o_ref.dtype)              # (tn, tc)
            o_ref[:, 0, :] = avg
            o_ref[:, 1, :] = mx

    return kernel


@functools.partial(jax.jit, static_argnames=("ts_max",))
def avg_max_pool_concat(x, *, ts_max=None):
    """x: (N, C, D, H, W) -> (N, 2*C) = concat([global_avg, global_max], dim=1)."""
    n, c, d, h, w = x.shape
    s = d * h * w
    x_flat = x.reshape(n, c, s)

    itemsize = jnp.dtype(x.dtype).itemsize
    cap = _vmem_capacity_bytes()
    input_budget = int(0.45 * cap)      # for the double-buffered input block
    vmem_limit = int(0.75 * cap)        # compiler scoped-VMEM limit (gen-aware)

    # Only tiny-S inputs (< 128 lanes) are padded so the lane-dim block can be 128;
    # for S >= 128 the in-kernel mask handles Pallas's padded edge tile directly,
    # avoiding an extra full HBM pass (the old jnp.pad of the whole tensor).
    if s < 128:
        x_flat = jnp.pad(x_flat, ((0, 0), (0, 0), (0, 128 - s)))
    s_arr = x_flat.shape[-1]

    # --- spatial tile first (long contiguous DMA runs), then batch/channel blocks ---
    ts_cap = 128 if s < 128 else _round_down(s, 128)    # never exceed the array dim
    ts = min(ts_cap, max(128, _round_down(input_budget // max(1, 2 * itemsize * c), 128)))
    if ts_max is not None:
        ts = min(ts, max(128, _round_down(ts_max, 128)))
    s_blocks = pl.cdiv(s_arr, ts)

    # Batch-row blocking: only to amortize the ~0.35us/step overhead when one tile
    # already covers all of S; never at the expense of the spatial tile size.
    tn = 1
    if s_blocks == 1:
        step_bytes = c * ts * itemsize
        tn = max(1, min(n, 32, _TARGET_STEP_BYTES // max(1, step_bytes)))
    # v7x megacore: keep >= 2 blocks on a "parallel" axis when the batch allows it.
    if n >= 2 and pl.cdiv(n, tn) < 2:
        tn = pl.cdiv(n, 2)
    nb = pl.cdiv(n, tn)

    # Channel blocking (block must be a multiple of 128 because of the output's lane
    # dim): bounds accumulator / live-vreg state for wide C and gives v7x's second
    # TensorCore channel-parallel work when the batch axis has a single block.
    tc = c
    if c % 128 == 0 and c > 128:
        tc = min(c, 256)
        if nb == 1 and c // tc < 2:
            tc = max(128, _round_down(c // 2, 128))
    cb = pl.cdiv(c, tc)

    # TODO(synk): optional bf16 max-accumulator / pl.Buffered(3) sweeps for v7x bf16
    # inputs; kept f32 accumulation everywhere for correctness on v5e.
    kernel = _make_kernel(tn=tn, tc=tc, ts=ts, s_true=s, s_blocks=s_blocks)

    out = pl.pallas_call(
        kernel,
        out_shape=jax.ShapeDtypeStruct((n, 2, c), x.dtype),
        grid_spec=pltpu.PrefetchScalarGridSpec(
            num_scalar_prefetch=0,
            grid=(nb, cb, s_blocks),
            in_specs=[pl.BlockSpec((tn, tc, ts), lambda i, j, k: (i, j, k))],
            out_specs=pl.BlockSpec((tn, 2, tc), lambda i, j, k: (i, 0, j)),
            scratch_shapes=[
                pltpu.VMEM((tn, tc, 128), jnp.float32),   # running sum
                pltpu.VMEM((tn, tc, 128), jnp.float32),   # running max
            ],
        ),
        compiler_params=pltpu.CompilerParams(
            dimension_semantics=("parallel", "parallel", "arbitrary"),
            vmem_limit_bytes=vmem_limit,
        ),
    )(x_flat)

    return out.reshape(n, 2 * c)


def _reference(x):
    return jnp.concatenate(
        [jnp.mean(x, axis=(2, 3, 4)), jnp.max(x, axis=(2, 3, 4))], axis=1)


if __name__ == "__main__":
    # Lane-aligned S (single unmasked tile, two batch blocks).
    x = jax.random.normal(jax.random.PRNGKey(0), (2, 4, 4, 8, 8), dtype=jnp.float32)  # S=256
    out = jax.block_until_ready(avg_max_pool_concat(x))
    assert out.shape == (2, 8)
    assert jnp.allclose(out, _reference(x), atol=1e-5, rtol=1e-5)

    # Non-lane-aligned S, multiple spatial tiles: masking confined to the last tile.
    x2 = jax.random.normal(jax.random.PRNGKey(1), (3, 5, 3, 7, 9), dtype=jnp.float32)  # S=189
    out2 = jax.block_until_ready(avg_max_pool_concat(x2, ts_max=128))
    assert jnp.allclose(out2, _reference(x2), atol=1e-5, rtol=1e-5)

    # Tiny S (< 128): wrapper pad path, batch-row blocking, partial last batch block.
    x3 = jax.random.normal(jax.random.PRNGKey(2), (10, 4, 2, 3, 5), dtype=jnp.float32)  # S=30
    out3 = jax.block_until_ready(avg_max_pool_concat(x3))
    assert jnp.allclose(out3, _reference(x3), atol=1e-5, rtol=1e-5)

    # Larger S: exercises the rolled pl.loop chunk path + crossing-chunk mask.
    x4 = jax.random.normal(jax.random.PRNGKey(3), (2, 4, 9, 16, 17), dtype=jnp.float32)  # S=2448
    out4 = jax.block_until_ready(avg_max_pool_concat(x4))
    assert jnp.allclose(out4, _reference(x4), atol=1e-5, rtol=1e-5)

    # bf16 input: HBM bytes halved, accumulation stays f32.
    x5 = jax.random.normal(jax.random.PRNGKey(4), (2, 8, 4, 4, 9), dtype=jnp.bfloat16)  # S=144
    out5 = jax.block_until_ready(avg_max_pool_concat(x5))
    assert out5.dtype == jnp.bfloat16
    assert jnp.allclose(out5.astype(jnp.float32),
                        _reference(x5.astype(jnp.float32)), atol=2e-2, rtol=2e-2)

    print("KERNEL_OK")
</pallas_src>

<mosaic_0001>
module attributes {stable_mosaic.version = 11 : i64} {
  func.func @kernel(%arg0: i32, %arg1: i32, %arg2: i32, %arg3: memref<1x4x256xf32, #tpu.memory_space<vmem>>, %arg4: memref<1x2x4xf32, #tpu.memory_space<vmem>>, %arg5: memref<1x4x128xf32, #tpu.memory_space<vmem>>, %arg6: memref<1x4x128xf32, #tpu.memory_space<vmem>>) attributes {dimension_semantics = [#tpu.dimension_semantics<parallel>, #tpu.dimension_semantics<parallel>, #tpu.dimension_semantics<arbitrary>], iteration_bounds = array<i64: 2, 1, 1>, scalar_prefetch = 0 : i64, scratch_operands = 2 : i64, tpu.core_type = #tpu.core_type<tc>, window_params = [{transform_indices = @transform_0, window_bounds = array<i64: 1, 4, 256>}, {transform_indices = @transform_1, window_bounds = array<i64: 1, 2, 4>}]} {
    %c0_i32 = arith.constant 0 : i32
    %0 = arith.cmpi eq, %arg2, %c0_i32 : i32
    %1 = arith.extui %0 : i1 to i32
    %c0_i32_0 = arith.constant 0 : i32
    %2 = arith.cmpi ne, %1, %c0_i32_0 : i32
    scf.if %2 {
      %cst = arith.constant 0.000000e+00 : f32
      %20 = vector.broadcast %cst : f32 to vector<1x4x128xf32>
      %c0_31 = arith.constant 0 : index
      %c0_32 = arith.constant 0 : index
      %c0_33 = arith.constant 0 : index
      %21 = vector.load %arg5[%c0_31, %c0_32, %c0_33] : memref<1x4x128xf32, #tpu.memory_space<vmem>>, vector<1x4x128xf32>
      tpu.vector_store %arg5[%c0_31, %c0_32, %c0_33], %20 {strides = array<i32>} : memref<1x4x128xf32, #tpu.memory_space<vmem>>, vector<1x4x128xf32>,
      %cst_34 = arith.constant 0xFF800000 : f32
      %22 = vector.broadcast %cst_34 : f32 to vector<1x4x128xf32>
      %c0_35 = arith.constant 0 : index
      %c0_36 = arith.constant 0 : index
      %c0_37 = arith.constant 0 : index
      %23 = vector.load %arg6[%c0_35, %c0_36, %c0_37] : memref<1x4x128xf32, #tpu.memory_space<vmem>>, vector<1x4x128xf32>
      tpu.vector_store %arg6[%c0_35, %c0_36, %c0_37], %22 {strides = array<i32>} : memref<1x4x128xf32, #tpu.memory_space<vmem>>, vector<1x4x128xf32>,
    } else {
    }
    %c0 = arith.constant 0 : index
    %c0_1 = arith.constant 0 : index
    %c0_2 = arith.constant 0 : index
    %3 = vector.load %arg3[%c0, %c0_1, %c0_2] : memref<1x4x256xf32, #tpu.memory_space<vmem>>, vector<1x4x128xf32>
    %c0_3 = arith.constant 0 : index
    %c0_4 = arith.constant 0 : index
    %c0_5 = arith.constant 0 : index
    %4 = vector.load %arg5[%c0_3, %c0_4, %c0_5] : memref<1x4x128xf32, #tpu.memory_space<vmem>>, vector<1x4x128xf32>
    %5 = arith.addf %4, %3 : vector<1x4x128xf32>
    %c0_6 = arith.constant 0 : index
    %c0_7 = arith.constant 0 : index
    %c0_8 = arith.constant 0 : index
    %6 = vector.load %arg5[%c0_6, %c0_7, %c0_8] : memref<1x4x128xf32, #tpu.memory_space<vmem>>, vector<1x4x128xf32>
    tpu.vector_store %arg5[%c0_6, %c0_7, %c0_8], %5 {strides = array<i32>} : memref<1x4x128xf32, #tpu.memory_space<vmem>>, vector<1x4x128xf32>,
    %c0_9 = arith.constant 0 : index
    %c0_10 = arith.constant 0 : index
    %c0_11 = arith.constant 0 : index
    %7 = vector.load %arg6[%c0_9, %c0_10, %c0_11] : memref<1x4x128xf32, #tpu.memory_space<vmem>>, vector<1x4x128xf32>
    %8 = arith.maximumf %7, %3 : vector<1x4x128xf32>
    %c0_12 = arith.constant 0 : index
    %c0_13 = arith.constant 0 : index
    %c0_14 = arith.constant 0 : index
    %9 = vector.load %arg6[%c0_12, %c0_13, %c0_14] : memref<1x4x128xf32, #tpu.memory_space<vmem>>, vector<1x4x128xf32>
    tpu.vector_store %arg6[%c0_12, %c0_13, %c0_14], %8 {strides = array<i32>} : memref<1x4x128xf32, #tpu.memory_space<vmem>>, vector<1x4x128xf32>,
    %c0_15 = arith.constant 0 : index
    %c0_16 = arith.constant 0 : index
    %c128 = arith.constant 128 : index
    %10 = vector.load %arg3[%c0_15, %c0_16, %c128] : memref<1x4x256xf32, #tpu.memory_space<vmem>>, vector<1x4x128xf32>
    %c0_17 = arith.constant 0 : index
    %c0_18 = arith.constant 0 : index
    %c0_19 = arith.constant 0 : index
    %11 = vector.load %arg5[%c0_17, %c0_18, %c0_19] : memref<1x4x128xf32, #tpu.memory_space<vmem>>, vector<1x4x128xf32>
    %12 = arith.addf %11, %10 : vector<1x4x128xf32>
    %c0_20 = arith.constant 0 : index
    %c0_21 = arith.constant 0 : index
    %c0_22 = arith.constant 0 : index
    %13 = vector.load %arg5[%c0_20, %c0_21, %c0_22] : memref<1x4x128xf32, #tpu.memory_space<vmem>>, vector<1x4x128xf32>
    tpu.vector_store %arg5[%c0_20, %c0_21, %c0_22], %12 {strides = array<i32>} : memref<1x4x128xf32, #tpu.memory_space<vmem>>, vector<1x4x128xf32>,
    %c0_23 = arith.constant 0 : index
    %c0_24 = arith.constant 0 : index
    %c0_25 = arith.constant 0 : index
    %14 = vector.load %arg6[%c0_23, %c0_24, %c0_25] : memref<1x4x128xf32, #tpu.memory_space<vmem>>, vector<1x4x128xf32>
    %15 = arith.maximumf %14, %10 : vector<1x4x128xf32>
    %c0_26 = arith.constant 0 : index
    %c0_27 = arith.constant 0 : index
    %c0_28 = arith.constant 0 : index
    %16 = vector.load %arg6[%c0_26, %c0_27, %c0_28] : memref<1x4x128xf32, #tpu.memory_space<vmem>>, vector<1x4x128xf32>
    tpu.vector_store %arg6[%c0_26, %c0_27, %c0_28], %15 {strides = array<i32>} : memref<1x4x128xf32, #tpu.memory_space<vmem>>, vector<1x4x128xf32>,
    %c0_i32_29 = arith.constant 0 : i32
    %17 = arith.cmpi eq, %arg2, %c0_i32_29 : i32
    %18 = arith.extui %17 : i1 to i32
    %c0_i32_30 = arith.constant 0 : i32
    %19 = arith.cmpi ne, %18, %c0_i32_30 : i32
    scf.if %19 {
      %c0_31 = arith.constant 0 : index
      %c0_32 = arith.constant 0 : index
      %c0_33 = arith.constant 0 : index
      %20 = vector.load %arg5[%c0_31, %c0_32, %c0_33] : memref<1x4x128xf32, #tpu.memory_space<vmem>>, vector<1x4x128xf32>
      %cst = arith.constant dense<0.000000e+00> : vector<1x4xf32>
      %21 = vector.multi_reduction <add>, %20, %cst [2] : vector<1x4x128xf32> to vector<1x4xf32>
      %cst_34 = arith.constant 3.906250e-03 : f32
      %22 = vector.broadcast %cst_34 : f32 to vector<1x4xf32>
      %23 = arith.mulf %21, %22 : vector<1x4xf32>
      %c0_35 = arith.constant 0 : index
      %c0_36 = arith.constant 0 : index
      %c0_37 = arith.constant 0 : index
      %24 = vector.load %arg6[%c0_35, %c0_36, %c0_37] : memref<1x4x128xf32, #tpu.memory_space<vmem>>, vector<1x4x128xf32>
      %cst_38 = arith.constant dense<0xFF800000> : vector<1x4xf32>
      %25 = vector.multi_reduction <maximumf>, %24, %cst_38 [2] : vector<1x4x128xf32> to vector<1x4xf32>
      %c0_39 = arith.constant 0 : index
      %c0_40 = arith.constant 0 : index
      %c0_41 = arith.constant 0 : index
      %26 = vector.load %arg4[%c0_39, %c0_40, %c0_41] : memref<1x2x4xf32, #tpu.memory_space<vmem>>, vector<1x1x4xf32>
      %27 = vector.shape_cast %26 : vector<1x1x4xf32> to vector<1x4xf32>
      %28 = vector.shape_cast %23 : vector<1x4xf32> to vector<1x1x4xf32>
      tpu.vector_store %arg4[%c0_39, %c0_40, %c0_41], %28 {strides = array<i32>} : memref<1x2x4xf32, #tpu.memory_space<vmem>>, vector<1x1x4xf32>,
      %c0_42 = arith.constant 0 : index
      %c1 = arith.constant 1 : index
      %c0_43 = arith.constant 0 : index
      %29 = vector.load %arg4[%c0_42, %c1, %c0_43] : memref<1x2x4xf32, #tpu.memory_space<vmem>>, vector<1x1x4xf32>
      %30 = vector.shape_cast %29 : vector<1x1x4xf32> to vector<1x4xf32>
      %31 = vector.shape_cast %25 : vector<1x4xf32> to vector<1x1x4xf32>
      tpu.vector_store %arg4[%c0_42, %c1, %c0_43], %31 {strides = array<i32>} : memref<1x2x4xf32, #tpu.memory_space<vmem>>, vector<1x1x4xf32>,
    } else {
    }
    return
  }
  func.func @transform_0(%arg0: i32, %arg1: i32, %arg2: i32) -> (i32, i32, i32) {
    %c0_i32 = arith.constant 0 : i32
    return %arg0, %arg1, %arg2 : i32, i32, i32
  }
  func.func @transform_1(%arg0: i32, %arg1: i32, %arg2: i32) -> (i32, i32, i32) {
    %c0_i32 = arith.constant 0 : i32
    %c0_i32_0 = arith.constant 0 : i32
    return %arg0, %c0_i32, %arg1 : i32, i32, i32
  }
}

</mosaic_0001>

<llo_original>
// kernel: avg_max_pool_concat.1
$region0: #{avg_max_pool_concat.1}
  #allocation0 [shape = 'u32[]', space=smem, size = 0x4, offset = 0x4, fixed_abs, tag = 'smem constant byte address 0x4 - core index']
  #allocation1 [shape = 'u32[144,128]{1,0:T(1,128)}', space=vmem, size = 0x12000, scoped, tag = 'internal scratch']
  #allocation2 [shape = 'f32[1,4,128]{2,1,0:T(4,128)}', space=vmem, size = 0x800, scoped, tag = 'scratch operand']
  #allocation3 [shape = 'f32[1,4,128]{2,1,0:T(4,128)}', space=vmem, size = 0x800, scoped, tag = 'scratch operand']
  %s0 = inlined_call_operand.vmem [shape: f32[2,4,256], index: 0, kind: input, shape index: {}]
  %s1 = inlined_call_operand.vmem [shape: f32[2,2,4], index: 1, kind: output, shape index: {}]
  %s2 = sld [smem:[#allocation0]]
  $region45: #{avg_max_pool_concat.1} parent=0
    _
  %s4 = ssub.s32 1, %s2
  %s5 = scalar_select 0, %s4, %s2
  loop: start=0, step=1, limit=4
  $region2: #{avg_max_pool_concat.1} parent=0 // loop_pre_header
    _
  $region3: #{avg_max_pool_concat.1} parent=0 // loop_header
    %s7 = sphi 0, %s11
    %p8 = scmp.ge.s32.totalorder %s7, 4
    %s14 = sphi 0, %s33
    %s15 = sphi 0, %s29
    %s16 = sphi 0, %s25
    %s17 = sphi 0, %s14
    %s18 = sphi 0, %s15
    %s19 = sphi 0, %s16
    %s20 = sphi 0, %s17
    %s21 = sphi 0, %s18
    %s22 = sphi 0, %s19
    %s40 = sphi 0, %s42
    %s43 = sphi 0, %s40
    %s44 = sphi 0, %s43
    %s60 = sphi 0, %s44
    %s68 = sphi 0, %s70
    %s71 = sphi 0, %s68
    %s72 = sphi 0, %s71
    %s88 = sphi 0, %s72
  $region4: #{avg_max_pool_concat.1} parent=0 // loop_header_branch
    %10 = sbr.rel (%p8) target = $region8
  $region5: #{avg_max_pool_concat.1} parent=0 // loop_body
    %s12 = ssub.s32 %s7, 1
    %s13 = ssub.s32 %s7, 2
    %s23 = sadd.s32 1, %s16
    %p24 = scmp.ge.s32.totalorder %s23, 1
    %s25 = scalar_select %p24, 0, %s23
    %s26 = sadd.s32 1, %s15
    %s27 = scalar_select %p24, %s26, %s15
    %p28 = scmp.ge.s32.totalorder %s27, 1
    %s29 = scalar_select %p28, 0, %s27
    %s30 = sadd.s32 1, %s14
    %s31 = scalar_select %p28, %s30, %s14
    %p32 = scmp.ge.s32.totalorder %s31, 2
    %s33 = scalar_select %p32, 0, %s31
    %s34 = ssub.s32 %s14, %s33
    %s35 = ssub.s32 %s15, %s29
    %s36 = sor.u32 %s34, %s35
    %s37 = ssub.s32 %s16, %s25
    %s38 = sor.u32 %s36, %s37
    %p39 = scmp.eq.s32.totalorder %s38, 0
    %s41 = sadd.s32 %s40, 1
    %s42 = scalar_select %p39, %s40, %s41
    %p45 = pneg %p39
    %p46 = scmp.eq.s32.totalorder %s7, 1
    %p47 = por %p45, %p46
    %p48 = scmp.ne.s32.totalorder %s40, %s43
    %p49 = scmp.eq.s32.totalorder %s7, 0
    %p50 = por %p48, %p49
    %p51 = scmp.ne.s32.totalorder %s40, %s43
    %p52 = scmp.eq.s32.totalorder %s12, 1
    %p53 = por %p51, %p52
    %p54 = scmp.ne.s32.totalorder %s43, %s44
    %p55 = scmp.eq.s32.totalorder %s12, 0
    %p56 = por %p54, %p55
    %p57 = scmp.ne.s32.totalorder %s43, %s44
    %p58 = scmp.eq.s32.totalorder %s13, 1
    %p59 = por %p57, %p58
    %p61 = scmp.ne.s32.totalorder %s44, %s60
    %p62 = scmp.eq.s32.totalorder %s13, 0
    %p63 = por %p61, %p62
    %s64 = ssub.s32 %s14, %s33
    %s65 = ssub.s32 %s15, %s29
    %s66 = sor.u32 %s64, %s65
    %p67 = scmp.eq.s32.totalorder %s66, 0
    %s69 = sadd.s32 %s68, 1
    %s70 = scalar_select %p67, %s68, %s69
    %p73 = pneg %p67
    %p74 = scmp.eq.s32.totalorder %s7, 1
    %p75 = por %p73, %p74
    %p76 = scmp.ne.s32.totalorder %s68, %s71
    %p77 = scmp.eq.s32.totalorder %s7, 0
    %p78 = por %p76, %p77
    %p79 = scmp.ne.s32.totalorder %s68, %s71
    %p80 = scmp.eq.s32.totalorder %s12, 1
    %p81 = por %p79, %p80
    %p82 = scmp.ne.s32.totalorder %s71, %s72
    %p83 = scmp.eq.s32.totalorder %s12, 0
    %p84 = por %p82, %p83
    %p85 = scmp.ne.s32.totalorder %s71, %s72
    %p86 = scmp.eq.s32.totalorder %s13, 1
    %p87 = por %p85, %p86
    %p89 = scmp.ne.s32.totalorder %s72, %s88
    %p90 = scmp.eq.s32.totalorder %s13, 0
    %p91 = por %p89, %p90
    %p92 = scmp.le.s32.totalorder 1, %s7
    %p93 = scmp.lt.s32.totalorder %s7, 3
    %p94 = pnand %p92, %p93
    %p95 = pneg %p94
    // Predicated region
    $region9: #{avg_max_pool_concat.1} parent=5 // pred_check
      _
    $region10: #{avg_max_pool_concat.1} parent=5 // pred_check_branch
      %97 = sbr.rel (%p94) target = $region12
    $region11: #{avg_max_pool_concat.1} parent=5 // pred_region
      %s98 = ssub.s32 %s7, 1
    $region12: #{avg_max_pool_concat.1} parent=5 // pred_fallthru
      _
    %p99 = scmp.lt.s32.totalorder %s7, 2
    // Predicated region
    $region13: #{avg_max_pool_concat.1} parent=5 // pred_check
      %p100 = pneg %p99
    $region14: #{avg_max_pool_concat.1} parent=5 // pred_check_branch
      %102 = sbr.rel (%p100) target = $region16
    $region15: #{avg_max_pool_concat.1} parent=5 // pred_region
      // Predicated region
      $region17: #{avg_max_pool_concat.1} parent=15 // pred_check
        %p103 = pneg %p50
      $region18: #{avg_max_pool_concat.1} parent=15 // pred_check_branch
        %105 = sbr.rel (%p103) target = $region20
      $region19: #{avg_max_pool_concat.1} parent=15 // pred_region
        %s106 = smul.u32 2, %s16
        %p107 = scmp.lt.s32.totalorder %s14, 1
        %s108 = scalar_select %p107, %s14, 1
        %p109 = scmp.lt.s32.totalorder %s15, 0
        %s110 = scalar_select %p109, %s15, 0
        %p111 = scmp.lt.s32.totalorder %s106, 1
        %s112 = scalar_select %p111, %s106, 1
        %s113 = smul.addr %s110, 2
        %s114 = sadd.s32 %s112, %s113
        %s115 = smul.addr %s108, 2
        %s116 = sadd.s32 %s114, %s115
        %s117 = smul.addr %s116, 4
        %s118 = scalar_lea.vmem %s0, %s117
        %s119 = smul.u32 2, %s16
      $region20: #{avg_max_pool_concat.1} parent=15 // pred_fallthru
        _
    $region16: #{avg_max_pool_concat.1} parent=5 // pred_fallthru
      _
    %p120 = scmp.le.s32.totalorder 1, %s7
    %p121 = scmp.lt.s32.totalorder %s7, 3
    %p122 = pnand %p120, %p121
    %p123 = pneg %p122
    // Predicated region
    $region21: #{avg_max_pool_concat.1} parent=5 // pred_check
      _
    $region22: #{avg_max_pool_concat.1} parent=5 // pred_check_branch
      %125 = sbr.rel (%p122) target = $region24
    $region23: #{avg_max_pool_concat.1} parent=5 // pred_region
      %s126 = ssub.s32 %s7, 1
      %s127 = smul.u32 2, %s19
      %p128 = scmp.lt.s32.totalorder %s17, 1
      %s129 = scalar_select %p128, %s17, 1
      %p130 = scmp.lt.s32.totalorder %s18, 0
      %s131 = scalar_select %p130, %s18, 0
      %p132 = scmp.lt.s32.totalorder %s127, 1
      %s133 = scalar_select %p132, %s127, 1
      %s134 = smul.addr %s131, 2
      %s135 = sadd.s32 %s133, %s134
      %s136 = smul.addr %s129, 2
      %s137 = sadd.s32 %s135, %s136
      %s138 = smul.addr %s137, 4
      %s139 = scalar_lea.vmem %s0, %s138
      %p140 = pneg %p56
      %p141 = pneg %p53
      %p142 = pneg %p84
      %p143 = pneg %p81
      %p144 = scmp.lt.s32.totalorder %s17, 1
      %s145 = scalar_select %p144, %s17, 1
      %p146 = scmp.lt.s32.totalorder %s18, 0
      %s147 = scalar_select %p146, %s18, 0
      %s148 = sadd.s32 %s147, %s145
      %s149 = smul.addr %s148, 2
      %s150 = scalar_lea.vmem %s1, %s149
      %s151 = smul.u32 2, %s19
      %p152 = scmp.lt.s32.totalorder %s17, 1
      %s153 = scalar_select %p152, %s17, 1
      %p154 = scmp.lt.s32.totalorder %s18, 0
      %s155 = scalar_select %p154, %s18, 0
      %p156 = scmp.lt.s32.totalorder %s151, 1
      %s157 = scalar_select %p156, %s151, 1
      %s158 = smul.addr %s155, 2
      %s159 = sadd.s32 %s157, %s158
      %s160 = smul.addr %s153, 2
      %s161 = sadd.s32 %s159, %s160
      %s162 = smul.addr %s161, 4
      %s163 = scalar_lea.vmem %s0, %s162
      %s164 = smul.u32 2, %s19
      %p165 = scmp.lt.s32.totalorder %s17, 1
      %s166 = scalar_select %p165, %s17, 1
      %p167 = scmp.lt.s32.totalorder %s18, 0
      %s168 = scalar_select %p167, %s18, 0
      %s169 = sadd.s32 %s168, %s166
      %s170 = smul.addr %s169, 2
      %s171 = scalar_lea.vmem %s1, %s170
      %p172 = scmp.eq.s32.totalorder %s19, 0
      // Predicated region
      $region25: #{avg_max_pool_concat.1} parent=23 // pred_check
        %p173 = pneg %p172
      $region26: #{avg_max_pool_concat.1} parent=23 // pred_check_branch
        %175 = sbr.rel (%p173) target = $region28
      $region27: #{avg_max_pool_concat.1} parent=23 // pred_region
        %176 = vst [vmem:[#allocation2] sm:$0xf] 0.0
        %177 = vst [vmem:[#allocation3] sm:$0xf] -inf
      $region28: #{avg_max_pool_concat.1} parent=23 // pred_fallthru
        _
      %v178 = vld [vmem:[%s163] sm:$0xf]
      %v179 = vld [vmem:[#allocation2] sm:$0xf]
      %v180 = vadd.f32 %v179, %v178
      %181 = vst [vmem:[#allocation2] sm:$0xf] %v180
      %v182 = vld [vmem:[#allocation3] sm:$0xf]
      %v183 = vmax.f32 %v182, %v178
      %184 = vst [vmem:[#allocation3] sm:$0xf] %v183
      %v185 = vld [vmem:[%s163 + $0x4] sm:$0xf]
      %v186 = vld [vmem:[#allocation2] sm:$0xf]
      %v187 = vadd.f32 %v186, %v185
      %188 = vst [vmem:[#allocation2] sm:$0xf] %v187
      %v189 = vld [vmem:[#allocation3] sm:$0xf]
      %v190 = vmax.f32 %v189, %v185
      %191 = vst [vmem:[#allocation3] sm:$0xf] %v190
      // Predicated region
      $region29: #{avg_max_pool_concat.1} parent=23 // pred_check
        %p192 = pneg %p172
      $region30: #{avg_max_pool_concat.1} parent=23 // pred_check_branch
        %194 = sbr.rel (%p192) target = $region32
      $region31: #{avg_max_pool_concat.1} parent=23 // pred_region
        %v195 = vld [vmem:[#allocation2] sm:$0xf]
        %vm196 = vcmask 1043456
        %v197 = vsel %vm196, %v195, 0.0
        %198 = vadd.xlane.f32.xlu0 %v197
        %v199 = vpop.xlane.xlu0 %198
        %v200 = vmul.f32 %v199, 0.00390625
        %v201 = vld [vmem:[#allocation3] sm:$0xf]
        %v202 = vsel %vm196, %v201, -inf
        %203 = vmax.xlane.f32.xlu0 %v202
        %v204 = vpop.xlane.xlu0 %203
        %v206 = vlaneseq
        %v207 = vand.u32 %v206, 127
        %v208 = vlaneseq
        %v209 = vshrl.u32 %v208, 7
        %v210 = vsub.s32 %v207, %v209
        %v211 = vrot.slane %v200, %v210
        %vm213 = vcmask 24576
        %214 = vst.msk [vmem:[%s171] sm:$0x1] %vm213, %v211
        %v216 = vlaneseq
        %v217 = vshrl.u32 %v216, 7
        %v218 = vsub.s32 %v207, %v217
        %v219 = vrot.slane %v204, %v218
        %221 = vst.msk [vmem:[%s171 + $0x1] sm:$0x1] %vm213, %v219
      $region32: #{avg_max_pool_concat.1} parent=23 // pred_fallthru
        _
      %p222 = scmp.lt.s32.totalorder %s17, 1
      %s223 = scalar_select %p222, %s17, 1
      %p224 = scmp.lt.s32.totalorder %s18, 0
      %s225 = scalar_select %p224, %s18, 0
      %s226 = sadd.s32 %s225, %s223
      %s227 = smul.addr %s226, 2
      %s228 = scalar_lea.vmem %s1, %s227
      // Predicated region
      $region33: #{avg_max_pool_concat.1} parent=23 // pred_check
        %p229 = pneg %p81
      $region34: #{avg_max_pool_concat.1} parent=23 // pred_check_branch
        %231 = sbr.rel (%p229) target = $region36
      $region35: #{avg_max_pool_concat.1} parent=23 // pred_region
        _
      $region36: #{avg_max_pool_concat.1} parent=23 // pred_fallthru
        _
    $region24: #{avg_max_pool_concat.1} parent=5 // pred_fallthru
      _
    %p232 = scmp.le.s32.totalorder 2, %s7
    // Predicated region
    $region37: #{avg_max_pool_concat.1} parent=5 // pred_check
      %p233 = pneg %p232
    $region38: #{avg_max_pool_concat.1} parent=5 // pred_check_branch
      %235 = sbr.rel (%p233) target = $region40
    $region39: #{avg_max_pool_concat.1} parent=5 // pred_region
      %s236 = ssub.s32 %s7, 2
      // Predicated region
      $region41: #{avg_max_pool_concat.1} parent=39 // pred_check
        %p237 = pneg %p87
      $region42: #{avg_max_pool_concat.1} parent=39 // pred_check_branch
        %239 = sbr.rel (%p237) target = $region44
      $region43: #{avg_max_pool_concat.1} parent=39 // pred_region
        %p240 = scmp.lt.s32.totalorder %s20, 1
        %s241 = scalar_select %p240, %s20, 1
        %p242 = scmp.lt.s32.totalorder %s21, 0
        %s243 = scalar_select %p242, %s21, 0
        %s244 = sadd.s32 %s243, %s241
        %s245 = smul.addr %s244, 2
        %s246 = scalar_lea.vmem %s1, %s245
      $region44: #{avg_max_pool_concat.1} parent=39 // pred_fallthru
        _
    $region40: #{avg_max_pool_concat.1} parent=5 // pred_fallthru
      _
  $region6: #{avg_max_pool_concat.1} parent=0 // loop_footer
    %s11 = sadd.s32 1, %s7
  $region7: #{avg_max_pool_concat.1} parent=0 // loop_footer_branch
    %6 = sbr.rel target = $region3
  $region8: #{avg_max_pool_concat.1} parent=0 // loop_exit
    _

</llo_original>
